<compile_context>
chip_gen: v6e
topology: v6e:2x2x1
jax: 0.10.0
libtpu: 0.0.40
codegen_flags: <defaults>
</compile_context>

<pallas_src>
import jax
import jax.numpy as jnp
from jax.experimental import pallas as pl
from jax.experimental.pallas import tpu as pltpu


def _round_up(n, m):
    return ((n + m - 1) // m) * m


def fraud_kernel(x_ref, wd_ref, watt_ref, w1_ref, w2_ref, bias_ref, o_ref):
    H = wd_ref.shape[1]       # hidden dim (32)
    F1 = w1_ref.shape[1]      # fc1 width (16)

    x = x_ref[...]                                   # (tile_b, input_dim)

    # packed biases (128-lane aligned slots -> aligned static slices)
    bd = bias_ref[:, 0:H]                            # (1, H)   dense bias
    batt = bias_ref[:, 128:128 + H]                  # (1, H)   fused attn bias
    b1 = bias_ref[:, 256:256 + F1]                   # (1, F1)  fused fc1 bias
    b2 = bias_ref[:, 384:385]                        # (1, 1)   fc2 bias

    # dense + ReLU
    h = jnp.dot(x, wd_ref[...], preferred_element_type=jnp.float32) + bd
    h = jnp.maximum(h, 0.0)

    # fused residual + single-key attention:  y = h + out_proj(v_proj(h))
    y = jnp.dot(h, watt_ref[...], preferred_element_type=jnp.float32) + batt

    # LayerNorm statistics (gamma/beta already folded into fc1 weights)
    mean = jnp.mean(y, axis=-1, keepdims=True)
    var = jnp.mean(jnp.square(y - mean), axis=-1, keepdims=True)
    yn = (y - mean) * jax.lax.rsqrt(var + 1e-5)

    # fc1 + ReLU   (dropout == identity in eval mode)
    z = jnp.dot(yn, w1_ref[...], preferred_element_type=jnp.float32) + b1
    z = jnp.maximum(z, 0.0)

    # fc2 computed transposed -> lane-dense (1, tile_b) row, then sigmoid
    logit = jnp.dot(w2_ref[...], z.T, preferred_element_type=jnp.float32) + b2
    o_ref[0] = jax.nn.sigmoid(logit)                 # block (1, 1, tile_b)


def transformer_fraud_forward(x, fused, *, tile_b=None):
    B, input_dim = x.shape

    if tile_b is None:
        # Large tiles amortize the ~0.35us per-grid-step overhead; keep the
        # double-buffered x tile tiny relative to VMEM (safe on v5e/v6e/v7x).
        tile_b = min(1024, _round_up(B, 8))
    tile_b = max(8, _round_up(tile_b, 8))

    B_pad = _round_up(B, tile_b)
    if B_pad != B:
        x = jnp.pad(x, ((0, B_pad - B), (0, 0)))
    num_tiles = B_pad // tile_b

    const2 = lambda i: (0, 0)     # weights: one resident block for all steps

    out = pl.pallas_call(
        fraud_kernel,
        out_shape=jax.ShapeDtypeStruct((num_tiles, 1, tile_b), jnp.float32),
        grid_spec=pltpu.PrefetchScalarGridSpec(
            num_scalar_prefetch=0,
            grid=(num_tiles,),
            in_specs=[
                pl.BlockSpec((tile_b, input_dim), lambda i: (i, 0)),
                pl.BlockSpec(fused["wd"].shape, const2),
                pl.BlockSpec(fused["watt"].shape, const2),
                pl.BlockSpec(fused["w1"].shape, const2),
                pl.BlockSpec(fused["w2"].shape, const2),
                pl.BlockSpec(fused["bias"].shape, const2),
            ],
            out_specs=pl.BlockSpec((1, 1, tile_b), lambda i: (i, 0, 0)),
        ),
        compiler_params=pltpu.CompilerParams(
            dimension_semantics=("parallel",)),
    )(x, fused["wd"], fused["watt"], fused["w1"], fused["w2"], fused["bias"])

    # (num_tiles, 1, tile_b) row-major flatten == batch order
    return out.reshape(B_pad, 1)[:B]


def init_params(key, input_dim, hidden_dim=32):
    """Raw (un-fused) parameters, all linear weights stored as (in, out)."""
    ks = jax.random.split(key, 8)
    scale = 0.1
    return {
        "wd": scale * jax.random.normal(ks[0], (input_dim, hidden_dim), jnp.float32),
        "bd": scale * jax.random.normal(ks[1], (1, hidden_dim), jnp.float32),
        # v-slice of MHA in_proj (q/k slices don't affect the seq_len==1 output)
        "wv": scale * jax.random.normal(ks[2], (hidden_dim, hidden_dim), jnp.float32),
        "bv": scale * jax.random.normal(ks[3], (1, hidden_dim), jnp.float32),
        "wo": scale * jax.random.normal(ks[4], (hidden_dim, hidden_dim), jnp.float32),
        "bo": jnp.zeros((1, hidden_dim), jnp.float32),
        "gamma": jnp.ones((1, hidden_dim), jnp.float32),
        "beta": jnp.zeros((1, hidden_dim), jnp.float32),
        "w1": scale * jax.random.normal(ks[5], (hidden_dim, 16), jnp.float32),
        "b1": scale * jax.random.normal(ks[6], (1, 16), jnp.float32),
        "w2": scale * jax.random.normal(ks[7], (16, 1), jnp.float32),
        "b2": jnp.zeros((1, 1), jnp.float32),
    }


def fuse_params(p):
    """Exact algebraic fusion of attention/residual, LayerNorm affine, biases."""
    H = p["wd"].shape[1]
    F1 = p["w1"].shape[1]

    watt = jnp.eye(H, dtype=jnp.float32) + p["wv"] @ p["wo"]   # I + Wv Wo
    batt = p["bv"] @ p["wo"] + p["bo"]                          # (1, H)
    w1f = p["gamma"].reshape(H, 1) * p["w1"]                    # diag(gamma) W1
    b1f = p["beta"] @ p["w1"] + p["b1"]                         # (1, F1)
    w2row = p["w2"].reshape(1, F1)                              # (1, 16) == W2^T
    b2 = p["b2"].reshape(1, 1)

    bias = jnp.zeros((1, 512), jnp.float32)
    bias = bias.at[:, 0:H].set(p["bd"])
    bias = bias.at[:, 128:128 + H].set(batt)
    bias = bias.at[:, 256:256 + F1].set(b1f)
    bias = bias.at[:, 384:385].set(b2)

    return {"wd": p["wd"], "watt": watt, "w1": w1f, "w2": w2row, "bias": bias}


def reference_forward(x, p):
    """Pure-JAX reference using the raw (un-fused) parameters."""
    h = jnp.maximum(x @ p["wd"] + p["bd"], 0.0)
    v = h @ p["wv"] + p["bv"]
    attn = v @ p["wo"] + p["bo"]
    y = h + attn
    mean = jnp.mean(y, axis=-1, keepdims=True)
    var = jnp.mean((y - mean) ** 2, axis=-1, keepdims=True)
    yn = (y - mean) / jnp.sqrt(var + 1e-5) * p["gamma"] + p["beta"]
    z = jnp.maximum(yn @ p["w1"] + p["b1"], 0.0)
    return jax.nn.sigmoid(z @ p["w2"] + p["b2"])


if __name__ == "__main__":
    key = jax.random.PRNGKey(0)
    k_x, k_p = jax.random.split(key)

    # small deterministic test: non-multiple batch exercises padding + multi-tile
    batch, input_dim, hidden_dim = 20, 16, 32
    x = jax.random.normal(k_x, (batch, input_dim), jnp.float32)
    raw = init_params(k_p, input_dim, hidden_dim)
    fused = fuse_params(raw)

    out = transformer_fraud_forward(x, fused, tile_b=8)
    out = jax.block_until_ready(out)

    ref = reference_forward(x, raw)
    assert out.shape == (batch, 1)
    assert jnp.allclose(out, ref, atol=1e-5, rtol=1e-5)

    print("KERNEL_OK")
</pallas_src>

<mosaic_0001>
module attributes {stable_mosaic.version = 11 : i64} {
  func.func @fraud_kernel(%arg0: i32, %arg1: memref<8x16xf32, #tpu.memory_space<vmem>>, %arg2: memref<16x32xf32, #tpu.memory_space<vmem>>, %arg3: memref<32x32xf32, #tpu.memory_space<vmem>>, %arg4: memref<32x16xf32, #tpu.memory_space<vmem>>, %arg5: memref<1x16xf32, #tpu.memory_space<vmem>>, %arg6: memref<1x512xf32, #tpu.memory_space<vmem>>, %arg7: memref<1x1x8xf32, #tpu.memory_space<vmem>>) attributes {dimension_semantics = [#tpu.dimension_semantics<parallel>], iteration_bounds = array<i64: 3>, scalar_prefetch = 0 : i64, scratch_operands = 0 : i64, tpu.core_type = #tpu.core_type<tc>, window_params = [{transform_indices = @transform_0, window_bounds = array<i64: 8, 16>}, {pipeline_mode = #tpu.pipeline_mode<synchronous>, transform_indices = @transform_1, window_bounds = array<i64: 16, 32>}, {pipeline_mode = #tpu.pipeline_mode<synchronous>, transform_indices = @transform_2, window_bounds = array<i64: 32, 32>}, {pipeline_mode = #tpu.pipeline_mode<synchronous>, transform_indices = @transform_3, window_bounds = array<i64: 32, 16>}, {pipeline_mode = #tpu.pipeline_mode<synchronous>, transform_indices = @transform_4, window_bounds = array<i64: 1, 16>}, {pipeline_mode = #tpu.pipeline_mode<synchronous>, transform_indices = @transform_5, window_bounds = array<i64: 1, 512>}, {transform_indices = @transform_6, window_bounds = array<i64: 1, 1, 8>}]} {
    %c0 = arith.constant 0 : index
    %c0_0 = arith.constant 0 : index
    %0 = vector.load %arg1[%c0, %c0_0] : memref<8x16xf32, #tpu.memory_space<vmem>>, vector<8x16xf32>
    %c0_1 = arith.constant 0 : index
    %c0_2 = arith.constant 0 : index
    %1 = vector.load %arg6[%c0_1, %c0_2] : memref<1x512xf32, #tpu.memory_space<vmem>>, vector<1x32xf32>
    %c0_3 = arith.constant 0 : index
    %c128 = arith.constant 128 : index
    %2 = vector.load %arg6[%c0_3, %c128] : memref<1x512xf32, #tpu.memory_space<vmem>>, vector<1x32xf32>
    %c0_4 = arith.constant 0 : index
    %c256 = arith.constant 256 : index
    %3 = vector.load %arg6[%c0_4, %c256] : memref<1x512xf32, #tpu.memory_space<vmem>>, vector<1x16xf32>
    %c0_5 = arith.constant 0 : index
    %c384 = arith.constant 384 : index
    %4 = vector.load %arg6[%c0_5, %c384] : memref<1x512xf32, #tpu.memory_space<vmem>>, vector<1x1xf32>
    %c0_6 = arith.constant 0 : index
    %c0_7 = arith.constant 0 : index
    %5 = vector.load %arg2[%c0_6, %c0_7] : memref<16x32xf32, #tpu.memory_space<vmem>>, vector<16x32xf32>
    %cst = arith.constant dense<0.000000e+00> : vector<8x32xf32>
    %6 = tpu.matmul %0, %5, %cst {dimension_numbers = #tpu.dot_dimension_numbers<[1], [0], [0], [1], [0, 0, 1, 1], [], []>} : vector<8x16xf32>, vector<16x32xf32>, vector<8x32xf32> -> vector<8x32xf32>
    %7 = vector.broadcast %1 : vector<1x32xf32> to vector<8x32xf32>
    %8 = arith.addf %6, %7 : vector<8x32xf32>
    %cst_8 = arith.constant 0.000000e+00 : f32
    %9 = vector.broadcast %cst_8 : f32 to vector<8x32xf32>
    %10 = arith.maximumf %8, %9 : vector<8x32xf32>
    %c0_9 = arith.constant 0 : index
    %c0_10 = arith.constant 0 : index
    %11 = vector.load %arg3[%c0_9, %c0_10] : memref<32x32xf32, #tpu.memory_space<vmem>>, vector<32x32xf32>
    %cst_11 = arith.constant dense<0.000000e+00> : vector<8x32xf32>
    %12 = tpu.matmul %10, %11, %cst_11 {dimension_numbers = #tpu.dot_dimension_numbers<[1], [0], [0], [1], [0, 0, 1, 1], [], []>} : vector<8x32xf32>, vector<32x32xf32>, vector<8x32xf32> -> vector<8x32xf32>
    %13 = vector.broadcast %2 : vector<1x32xf32> to vector<8x32xf32>
    %14 = arith.addf %12, %13 : vector<8x32xf32>
    %cst_12 = arith.constant dense<0.000000e+00> : vector<8xf32>
    %15 = vector.multi_reduction <add>, %14, %cst_12 [1] : vector<8x32xf32> to vector<8xf32>
    %16 = vector.shape_cast %15 : vector<8xf32> to vector<8x1xf32>
    %cst_13 = arith.constant 3.200000e+01 : f32
    %17 = vector.broadcast %cst_13 : f32 to vector<8x1xf32>
    %18 = arith.divf %16, %17 : vector<8x1xf32>
    %19 = vector.broadcast %18 : vector<8x1xf32> to vector<8x32xf32>
    %20 = arith.subf %14, %19 : vector<8x32xf32>
    %21 = arith.mulf %20, %20 : vector<8x32xf32>
    %cst_14 = arith.constant dense<0.000000e+00> : vector<8xf32>
    %22 = vector.multi_reduction <add>, %21, %cst_14 [1] : vector<8x32xf32> to vector<8xf32>
    %23 = vector.shape_cast %22 : vector<8xf32> to vector<8x1xf32>
    %cst_15 = arith.constant 3.200000e+01 : f32
    %24 = vector.broadcast %cst_15 : f32 to vector<8x1xf32>
    %25 = arith.divf %23, %24 : vector<8x1xf32>
    %26 = vector.broadcast %18 : vector<8x1xf32> to vector<8x32xf32>
    %27 = arith.subf %14, %26 : vector<8x32xf32>
    %cst_16 = arith.constant 9.99999974E-6 : f32
    %28 = vector.broadcast %cst_16 : f32 to vector<8x1xf32>
    %29 = arith.addf %25, %28 : vector<8x1xf32>
    %30 = math.rsqrt %29 : vector<8x1xf32>
    %31 = vector.broadcast %30 : vector<8x1xf32> to vector<8x32xf32>
    %32 = arith.mulf %27, %31 : vector<8x32xf32>
    %c0_17 = arith.constant 0 : index
    %c0_18 = arith.constant 0 : index
    %33 = vector.load %arg4[%c0_17, %c0_18] : memref<32x16xf32, #tpu.memory_space<vmem>>, vector<32x16xf32>
    %cst_19 = arith.constant dense<0.000000e+00> : vector<8x16xf32>
    %34 = tpu.matmul %32, %33, %cst_19 {dimension_numbers = #tpu.dot_dimension_numbers<[1], [0], [0], [1], [0, 0, 1, 1], [], []>} : vector<8x32xf32>, vector<32x16xf32>, vector<8x16xf32> -> vector<8x16xf32>
    %35 = vector.broadcast %3 : vector<1x16xf32> to vector<8x16xf32>
    %36 = arith.addf %34, %35 : vector<8x16xf32>
    %cst_20 = arith.constant 0.000000e+00 : f32
    %37 = vector.broadcast %cst_20 : f32 to vector<8x16xf32>
    %38 = arith.maximumf %36, %37 : vector<8x16xf32>
    %c0_21 = arith.constant 0 : index
    %c0_22 = arith.constant 0 : index
    %39 = vector.load %arg5[%c0_21, %c0_22] : memref<1x16xf32, #tpu.memory_space<vmem>>, vector<1x16xf32>
    %40 = tpu.transpose %38, [1, 0] : vector<8x16xf32> -> vector<16x8xf32>
    %cst_23 = arith.constant dense<0.000000e+00> : vector<1x8xf32>
    %41 = tpu.matmul %39, %40, %cst_23 {dimension_numbers = #tpu.dot_dimension_numbers<[1], [0], [0], [1], [0, 0, 1, 1], [], []>} : vector<1x16xf32>, vector<16x8xf32>, vector<1x8xf32> -> vector<1x8xf32>
    %42 = vector.broadcast %4 : vector<1x1xf32> to vector<1x8xf32>
    %43 = arith.addf %41, %42 : vector<1x8xf32>
    %44 = arith.negf %43 : vector<1x8xf32>
    %45 = math.exp %44 : vector<1x8xf32>
    %cst_24 = arith.constant 1.000000e+00 : f32
    %46 = vector.broadcast %cst_24 : f32 to vector<1x8xf32>
    %47 = arith.addf %46, %45 : vector<1x8xf32>
    %48 = arith.divf %46, %47 : vector<1x8xf32>
    %c0_25 = arith.constant 0 : index
    %c0_26 = arith.constant 0 : index
    %c0_27 = arith.constant 0 : index
    %49 = vector.load %arg7[%c0_25, %c0_26, %c0_27] : memref<1x1x8xf32, #tpu.memory_space<vmem>>, vector<1x1x8xf32>
    %50 = vector.shape_cast %49 : vector<1x1x8xf32> to vector<1x8xf32>
    %51 = vector.shape_cast %48 : vector<1x8xf32> to vector<1x1x8xf32>
    tpu.vector_store %arg7[%c0_25, %c0_26, %c0_27], %51 {strides = array<i32>} : memref<1x1x8xf32, #tpu.memory_space<vmem>>, vector<1x1x8xf32>,
    return
  }
  func.func @transform_0(%arg0: i32) -> (i32, i32) {
    %c0_i32 = arith.constant 0 : i32
    %c0_i32_0 = arith.constant 0 : i32
    return %arg0, %c0_i32 : i32, i32
  }
  func.func @transform_1(%arg0: i32) -> (i32, i32) {
    %c0_i32 = arith.constant 0 : i32
    %c0_i32_0 = arith.constant 0 : i32
    %c0_i32_1 = arith.constant 0 : i32
    return %c0_i32, %c0_i32_0 : i32, i32
  }
  func.func @transform_2(%arg0: i32) -> (i32, i32) {
    %c0_i32 = arith.constant 0 : i32
    %c0_i32_0 = arith.constant 0 : i32
    %c0_i32_1 = arith.constant 0 : i32
    return %c0_i32, %c0_i32_0 : i32, i32
  }
  func.func @transform_3(%arg0: i32) -> (i32, i32) {
    %c0_i32 = arith.constant 0 : i32
    %c0_i32_0 = arith.constant 0 : i32
    %c0_i32_1 = arith.constant 0 : i32
    return %c0_i32, %c0_i32_0 : i32, i32
  }
  func.func @transform_4(%arg0: i32) -> (i32, i32) {
    %c0_i32 = arith.constant 0 : i32
    %c0_i32_0 = arith.constant 0 : i32
    %c0_i32_1 = arith.constant 0 : i32
    return %c0_i32, %c0_i32_0 : i32, i32
  }
  func.func @transform_5(%arg0: i32) -> (i32, i32) {
    %c0_i32 = arith.constant 0 : i32
    %c0_i32_0 = arith.constant 0 : i32
    %c0_i32_1 = arith.constant 0 : i32
    return %c0_i32, %c0_i32_0 : i32, i32
  }
  func.func @transform_6(%arg0: i32) -> (i32, i32, i32) {
    %c0_i32 = arith.constant 0 : i32
    %c0_i32_0 = arith.constant 0 : i32
    %c0_i32_1 = arith.constant 0 : i32
    return %arg0, %c0_i32, %c0_i32_0 : i32, i32, i32
  }
}

</mosaic_0001>

<llo_original>
// kernel: tpu_custom_call.1
$region0: #{tpu_custom_call.1}
  #allocation0 [shape = 'u32[]', space=smem, size = 0x4, offset = 0x4, fixed_abs, tag = 'smem constant byte address 0x4 - core index']
  #allocation1 [shape = 'u32[144,128]{1,0:T(1,128)}', space=vmem, size = 0x12000, scoped, tag = 'internal scratch']
  %s0 = inlined_call_operand.vmem [shape: f32[24,16], index: 0, kind: input, shape index: {}]
  %s1 = inlined_call_operand.vmem [shape: f32[16,32], index: 1, kind: input, shape index: {}]
  %s2 = inlined_call_operand.vmem [shape: f32[32,32], index: 2, kind: input, shape index: {}]
  %s3 = inlined_call_operand.vmem [shape: f32[32,16], index: 3, kind: input, shape index: {}]
  %s4 = inlined_call_operand.vmem [shape: f32[1,16], index: 4, kind: input, shape index: {}]
  %s5 = inlined_call_operand.vmem [shape: f32[1,512], index: 5, kind: input, shape index: {}]
  %s6 = inlined_call_operand.hbm [shape: f32[3,1,8], index: 6, kind: output, shape index: {}]
  %s7 = sld [smem:[#allocation0]]
  $region57: #{tpu_custom_call.1} parent=0
    _
  %s9 = ssub.s32 1, %s7
  %s10 = scalar_select 0, %s9, %s7
  $region1: #{tpu_custom_call.1} parent=0
    #allocation2 [shape = 'u8[1024]{0}', space=vmem, size = 0x400, scoped, tag = 'output window, operand 0']
    #allocation3 [shape = 's32[2]{0}', space=sflag, size = 0x8, scoped, tag = 'scoped memory for tpu_custom_call.1']
    %11 = vsyncpa [#allocation3], 0
    %s12 = scalar_lea.sflag [#allocation3], 1
    %13 = vsyncpa %s12, 0
    loop: start=0, step=1, limit=5
    $region2: #{tpu_custom_call.1} parent=1 // loop_pre_header
      _
    $region3: #{tpu_custom_call.1} parent=1 // loop_header
      %s15 = sphi 0, %s19
      %p16 = scmp.ge.s32.totalorder %s15, 5
      %s25 = sphi 0, %s27
      %s28 = sphi 0, %s25
      %s29 = sphi 0, %s28
      %s45 = sphi 0, %s29
      %s49 = sphi 0, %s49
      %s51 = sphi 0, %s49
      %s52 = sphi 0, %s51
      %s66 = sphi 0, %s52
      %s70 = sphi 0, %s70
      %s72 = sphi 0, %s70
      %s73 = sphi 0, %s72
      %s87 = sphi 0, %s73
      %s91 = sphi 0, %s91
      %s93 = sphi 0, %s91
      %s94 = sphi 0, %s93
      %s108 = sphi 0, %s94
      %s112 = sphi 0, %s112
      %s114 = sphi 0, %s112
      %s115 = sphi 0, %s114
      %s129 = sphi 0, %s115
      %s133 = sphi 0, %s133
      %s135 = sphi 0, %s133
      %s136 = sphi 0, %s135
      %s150 = sphi 0, %s136
      %s156 = sphi 0, %s158
      %s159 = sphi 0, %s156
      %s160 = sphi 0, %s159
      %s176 = sphi 0, %s160
    $region4: #{tpu_custom_call.1} parent=1 // loop_header_branch
      %18 = sbr.rel (%p16) target = $region8
    $region5: #{tpu_custom_call.1} parent=1 // loop_body
      %s20 = ssub.s32 %s15, 1
      %s21 = ssub.s32 %s15, 2
      %s22 = sadd.s32 %s15, 1
      %s23 = ssub.s32 %s15, %s22
      %p24 = scmp.eq.s32.totalorder %s23, 0
      %s26 = sadd.s32 %s25, 1
      %s27 = scalar_select %p24, %s25, %s26
      %p30 = pneg %p24
      %p31 = scmp.eq.s32.totalorder %s15, 2
      %p32 = por %p30, %p31
      %p33 = scmp.ne.s32.totalorder %s25, %s28
      %p34 = scmp.eq.s32.totalorder %s15, 0
      %p35 = por %p33, %p34
      %p36 = scmp.ne.s32.totalorder %s25, %s28
      %p37 = scmp.eq.s32.totalorder %s20, 2
      %p38 = por %p36, %p37
      %p39 = scmp.ne.s32.totalorder %s28, %s29
      %p40 = scmp.eq.s32.totalorder %s20, 0
      %p41 = por %p39, %p40
      %p42 = scmp.ne.s32.totalorder %s28, %s29
      %p43 = scmp.eq.s32.totalorder %s21, 2
      %p44 = por %p42, %p43
      %p46 = scmp.ne.s32.totalorder %s29, %s45
      %p47 = scmp.eq.s32.totalorder %s21, 0
      %p48 = por %p46, %p47
      %s50 = sadd.s32 %s49, 1
      %p53 = scmp.eq.s32.totalorder %s15, 2
      %p54 = scmp.ne.s32.totalorder %s49, %s51
      %p55 = scmp.eq.s32.totalorder %s15, 0
      %p56 = por %p54, %p55
      %p57 = scmp.ne.s32.totalorder %s49, %s51
      %p58 = scmp.eq.s32.totalorder %s20, 2
      %p59 = por %p57, %p58
      %p60 = scmp.ne.s32.totalorder %s51, %s52
      %p61 = scmp.eq.s32.totalorder %s20, 0
      %p62 = por %p60, %p61
      %p63 = scmp.ne.s32.totalorder %s51, %s52
      %p64 = scmp.eq.s32.totalorder %s21, 2
      %p65 = por %p63, %p64
      %p67 = scmp.ne.s32.totalorder %s52, %s66
      %p68 = scmp.eq.s32.totalorder %s21, 0
      %p69 = por %p67, %p68
      %s71 = sadd.s32 %s70, 1
      %p74 = scmp.eq.s32.totalorder %s15, 2
      %p75 = scmp.ne.s32.totalorder %s70, %s72
      %p76 = scmp.eq.s32.totalorder %s15, 0
      %p77 = por %p75, %p76
      %p78 = scmp.ne.s32.totalorder %s70, %s72
      %p79 = scmp.eq.s32.totalorder %s20, 2
      %p80 = por %p78, %p79
      %p81 = scmp.ne.s32.totalorder %s72, %s73
      %p82 = scmp.eq.s32.totalorder %s20, 0
      %p83 = por %p81, %p82
      %p84 = scmp.ne.s32.totalorder %s72, %s73
      %p85 = scmp.eq.s32.totalorder %s21, 2
      %p86 = por %p84, %p85
      %p88 = scmp.ne.s32.totalorder %s73, %s87
      %p89 = scmp.eq.s32.totalorder %s21, 0
      %p90 = por %p88, %p89
      %s92 = sadd.s32 %s91, 1
      %p95 = scmp.eq.s32.totalorder %s15, 2
      %p96 = scmp.ne.s32.totalorder %s91, %s93
      %p97 = scmp.eq.s32.totalorder %s15, 0
      %p98 = por %p96, %p97
      %p99 = scmp.ne.s32.totalorder %s91, %s93
      %p100 = scmp.eq.s32.totalorder %s20, 2
      %p101 = por %p99, %p100
      %p102 = scmp.ne.s32.totalorder %s93, %s94
      %p103 = scmp.eq.s32.totalorder %s20, 0
      %p104 = por %p102, %p103
      %p105 = scmp.ne.s32.totalorder %s93, %s94
      %p106 = scmp.eq.s32.totalorder %s21, 2
      %p107 = por %p105, %p106
      %p109 = scmp.ne.s32.totalorder %s94, %s108
      %p110 = scmp.eq.s32.totalorder %s21, 0
      %p111 = por %p109, %p110
      %s113 = sadd.s32 %s112, 1
      %p116 = scmp.eq.s32.totalorder %s15, 2
      %p117 = scmp.ne.s32.totalorder %s112, %s114
      %p118 = scmp.eq.s32.totalorder %s15, 0
      %p119 = por %p117, %p118
      %p120 = scmp.ne.s32.totalorder %s112, %s114
      %p121 = scmp.eq.s32.totalorder %s20, 2
      %p122 = por %p120, %p121
      %p123 = scmp.ne.s32.totalorder %s114, %s115
      %p124 = scmp.eq.s32.totalorder %s20, 0
      %p125 = por %p123, %p124
      %p126 = scmp.ne.s32.totalorder %s114, %s115
      %p127 = scmp.eq.s32.totalorder %s21, 2
      %p128 = por %p126, %p127
      %p130 = scmp.ne.s32.totalorder %s115, %s129
      %p131 = scmp.eq.s32.totalorder %s21, 0
      %p132 = por %p130, %p131
      %s134 = sadd.s32 %s133, 1
      %p137 = scmp.eq.s32.totalorder %s15, 2
      %p138 = scmp.ne.s32.totalorder %s133, %s135
      %p139 = scmp.eq.s32.totalorder %s15, 0
      %p140 = por %p138, %p139
      %p141 = scmp.ne.s32.totalorder %s133, %s135
      %p142 = scmp.eq.s32.totalorder %s20, 2
      %p143 = por %p141, %p142
      %p144 = scmp.ne.s32.totalorder %s135, %s136
      %p145 = scmp.eq.s32.totalorder %s20, 0
      %p146 = por %p144, %p145
      %p147 = scmp.ne.s32.totalorder %s135, %s136
      %p148 = scmp.eq.s32.totalorder %s21, 2
      %p149 = por %p147, %p148
      %p151 = scmp.ne.s32.totalorder %s136, %s150
      %p152 = scmp.eq.s32.totalorder %s21, 0
      %p153 = por %p151, %p152
      %s154 = ssub.s32 %s15, %s22
      %p155 = scmp.eq.s32.totalorder %s154, 0
      %s157 = sadd.s32 %s156, 1
      %s158 = scalar_select %p155, %s156, %s157
      %p161 = pneg %p155
      %p162 = scmp.eq.s32.totalorder %s15, 2
      %p163 = por %p161, %p162
      %p164 = scmp.ne.s32.totalorder %s156, %s159
      %p165 = scmp.eq.s32.totalorder %s15, 0
      %p166 = por %p164, %p165
      %p167 = scmp.ne.s32.totalorder %s156, %s159
      %p168 = scmp.eq.s32.totalorder %s20, 2
      %p169 = por %p167, %p168
      %p170 = scmp.ne.s32.totalorder %s159, %s160
      %p171 = scmp.eq.s32.totalorder %s20, 0
      %p172 = por %p170, %p171
      %p173 = scmp.ne.s32.totalorder %s159, %s160
      %p174 = scmp.eq.s32.totalorder %s21, 2
      %p175 = por %p173, %p174
      %p177 = scmp.ne.s32.totalorder %s160, %s176
      %p178 = scmp.eq.s32.totalorder %s21, 0
      %p179 = por %p177, %p178
      %p180 = scmp.le.s32.totalorder 1, %s15
      %p181 = scmp.lt.s32.totalorder %s15, 4
      %p182 = pnand %p180, %p181
      %p183 = pneg %p182
      // Predicated region
      $region9: #{tpu_custom_call.1} parent=5 // pred_check
        _
      $region10: #{tpu_custom_call.1} parent=5 // pred_check_branch
        %185 = sbr.rel (%p182) target = $region12
      $region11: #{tpu_custom_call.1} parent=5 // pred_region
        %s186 = ssub.s32 %s15, 1
        // Predicated region
        $region13: #{tpu_custom_call.1} parent=11 // pred_check
          %p187 = pneg %p62
        $region14: #{tpu_custom_call.1} parent=11 // pred_check_branch
          %189 = sbr.rel (%p187) target = $region16
        $region15: #{tpu_custom_call.1} parent=11 // pred_region
          _
        $region16: #{tpu_custom_call.1} parent=11 // pred_fallthru
          _
        // Predicated region
        $region17: #{tpu_custom_call.1} parent=11 // pred_check
          %p190 = pneg %p83
        $region18: #{tpu_custom_call.1} parent=11 // pred_check_branch
          %192 = sbr.rel (%p190) target = $region20
        $region19: #{tpu_custom_call.1} parent=11 // pred_region
          _
        $region20: #{tpu_custom_call.1} parent=11 // pred_fallthru
          _
        // Predicated region
        $region21: #{tpu_custom_call.1} parent=11 // pred_check
          %p193 = pneg %p104
        $region22: #{tpu_custom_call.1} parent=11 // pred_check_branch
          %195 = sbr.rel (%p193) target = $region24
        $region23: #{tpu_custom_call.1} parent=11 // pred_region
          _
        $region24: #{tpu_custom_call.1} parent=11 // pred_fallthru
          _
        // Predicated region
        $region25: #{tpu_custom_call.1} parent=11 // pred_check
          %p196 = pneg %p125
        $region26: #{tpu_custom_call.1} parent=11 // pred_check_branch
          %198 = sbr.rel (%p196) target = $region28
        $region27: #{tpu_custom_call.1} parent=11 // pred_region
          _
        $region28: #{tpu_custom_call.1} parent=11 // pred_fallthru
          _
        // Predicated region
        $region29: #{tpu_custom_call.1} parent=11 // pred_check
          %p199 = pneg %p146
        $region30: #{tpu_custom_call.1} parent=11 // pred_check_branch
          %201 = sbr.rel (%p199) target = $region32
        $region31: #{tpu_custom_call.1} parent=11 // pred_region
          _
        $region32: #{tpu_custom_call.1} parent=11 // pred_fallthru
          _
      $region12: #{tpu_custom_call.1} parent=5 // pred_fallthru
        _
      %p202 = scmp.lt.s32.totalorder %s15, 3
      // Predicated region
      $region33: #{tpu_custom_call.1} parent=5 // pred_check
        %p203 = pneg %p202
      $region34: #{tpu_custom_call.1} parent=5 // pred_check_branch
        %205 = sbr.rel (%p203) target = $region36
      $region35: #{tpu_custom_call.1} parent=5 // pred_region
        // Predicated region
        $region37: #{tpu_custom_call.1} parent=35 // pred_check
          %p206 = pneg %p35
        $region38: #{tpu_custom_call.1} parent=35 // pred_check_branch
          %208 = sbr.rel (%p206) target = $region40
        $region39: #{tpu_custom_call.1} parent=35 // pred_region
          %p209 = scmp.lt.s32.totalorder %s15, 2
          %s210 = scalar_select %p209, %s15, 2
          %s211 = smul.addr %s210, 8
          %s212 = scalar_lea.vmem %s0, %s211
        $region40: #{tpu_custom_call.1} parent=35 // pred_fallthru
          _
      $region36: #{tpu_custom_call.1} parent=5 // pred_fallthru
        _
      %p213 = scmp.le.s32.totalorder 1, %s15
      %p214 = scmp.lt.s32.totalorder %s15, 4
      %p215 = pnand %p213, %p214
      %p216 = pneg %p215
      // Predicated region
      $region41: #{tpu_custom_call.1} parent=5 // pred_check
        _
      $region42: #{tpu_custom_call.1} parent=5 // pred_check_branch
        %218 = sbr.rel (%p215) target = $region44
      $region43: #{tpu_custom_call.1} parent=5 // pred_region
        %s219 = ssub.s32 %s15, 1
        %p220 = scmp.lt.s32.totalorder %s20, 2
        %s221 = scalar_select %p220, %s20, 2
        %s222 = smul.addr %s221, 8
        %s223 = scalar_lea.vmem %s0, %s222
        %p224 = pneg %p41
        %p225 = pneg %p38
        %p226 = pneg %p62
        %p227 = pneg %p59
        %p228 = pneg %p83
        %p229 = pneg %p80
        %p230 = pneg %p104
        %p231 = pneg %p101
        %p232 = pneg %p125
        %p233 = pneg %p122
        %p234 = pneg %p146
        %p235 = pneg %p143
        %p236 = pneg %p172
        %p237 = pneg %p169
        %s238 = sand.u32 %s159, 1
        %s239 = scalar_lea.sflag [#allocation3], %s238
        %s240 = sand.u32 %s159, 1
        %s241 = scalar_lea.vmem [#allocation2], %s240
        %p242 = scmp.lt.s32.totalorder %s20, 2
        %s243 = scalar_select %p242, %s20, 2
        %s244 = smul.addr %s243, 8
        %s245 = scalar_lea.vmem %s0, %s244
        %v246 = vld [vmem:[%s245] sm:$0xff]
        %v247 = vld [vmem:[%s5] sm:$0x1]
        %v248 = vld [vmem:[%s5 + $0x1] sm:$0x1]
        %v249 = vld [vmem:[%s5 + $0x2] sm:$0x1]
        %v250 = vld [vmem:[%s5 + $0x3] sm:$0x1]
        %v251 = vld [vmem:[%s1] sm:$0xff]
        %v252 = vld [vmem:[%s1 + $0x8] sm:$0xff]
        %v254 = vlaneseq
        %v255 = vshrl.u32 %v254, 7
        %v256 = vsub.s32 0, %v255
        %v257 = vrot.slane %v247, %v256
        %vm259 = vcmask 130048
        %v261 = vsel %vm259, %v246, 0
        %263 = vmatprep.subr.mxu0 0.0
        %264 = vmatpush1.msra.mxu0 0.0
        %265 = vmatprep.subr.mxu0 0.0
        %266 = vmatpush1.msra.mxu0 0.0
        %267 = vmatprep.subr.mxu0 0.0
        %268 = vmatpush1.msra.mxu0 0.0
        %269 = vmatprep.subr.mxu0 0.0
        %270 = vmatpush1.msra.mxu0 0.0
        %271 = vmatprep.subr.mxu0 0.0
        %272 = vmatpush1.msra.mxu0 0.0
        %273 = vmatprep.subr.mxu0 0.0
        %274 = vmatpush1.msra.mxu0 0.0
        %275 = vmatprep.subr.mxu0 0.0
        %276 = vmatpush1.msra.mxu0 0.0
        %277 = vmatprep.subr.mxu0 0.0
        %278 = vmatpush1.msra.mxu0 0.0
        %279 = vmatprep.subr.mxu0 0.0
        %280 = vmatpush1.msra.mxu0 0.0
        %281 = vmatprep.subr.mxu0 0.0
        %282 = vmatpush1.msra.mxu0 0.0
        %283 = vmatprep.subr.mxu0 0.0
        %284 = vmatpush1.msra.mxu0 0.0
        %285 = vmatprep.subr.mxu0 0.0
        %286 = vmatpush1.msra.mxu0 0.0
        %287 = vmatprep.subr.mxu0 0.0
        %288 = vmatpush1.msra.mxu0 0.0
        %289 = vmatprep.subr.mxu0 0.0
        %290 = vmatpush1.msra.mxu0 0.0
        %291 = vmatprep.subr.mxu0 0.0
        %292 = vmatpush1.msra.mxu0 %v252
        %293 = vmatprep.subr.mxu0 0.0
        %294 = vmatpush1.msra.mxu0 %v251
        %295 = vmatprep.subr.mxu0 0.0
        %296 = vmatpush2.msra.mxu0 0.0
        %297 = vmatprep.subr.mxu0 0.0
        %298 = vmatpush2.msra.mxu0 0.0
        %299 = vmatprep.subr.mxu0 0.0
        %300 = vmatpush2.msra.mxu0 0.0
        %301 = vmatprep.subr.mxu0 0.0
        %302 = vmatpush2.msra.mxu0 0.0
        %303 = vmatprep.subr.mxu0 0.0
        %304 = vmatpush2.msra.mxu0 0.0
        %305 = vmatprep.subr.mxu0 0.0
        %306 = vmatpush2.msra.mxu0 0.0
        %307 = vmatprep.subr.mxu0 0.0
        %308 = vmatpush2.msra.mxu0 0.0
        %309 = vmatprep.subr.mxu0 0.0
        %310 = vmatpush2.msra.mxu0 0.0
        %311 = vmatprep.subr.mxu0 0.0
        %312 = vmatpush2.msra.mxu0 0.0
        %313 = vmatprep.subr.mxu0 0.0
        %314 = vmatpush2.msra.mxu0 0.0
        %315 = vmatprep.subr.mxu0 0.0
        %316 = vmatpush2.msra.mxu0 0.0
        %317 = vmatprep.subr.mxu0 0.0
        %318 = vmatpush2.msra.mxu0 0.0
        %319 = vmatprep.subr.mxu0 0.0
        %320 = vmatpush2.msra.mxu0 0.0
        %321 = vmatprep.subr.mxu0 0.0
        %322 = vmatpush2.msra.mxu0 0.0
        %323 = vmatprep.subr.mxu0 0.0
        %324 = vmatpush2.msra.mxu0 0.0
        %325 = vmatprep.subr.mxu0 0.0
        %326 = vmatpush2.msra.mxu0 0.0
        %327 = vmatprep.mubr.f32.mxu0 0.0
        %328 = vmatmul.mubr.f32.gmra.mxu0 %v261
        %v329 = vpop.f32.mrf.mxu0
        %v330 = vadd.f32 %v257, %v329
        %v331 = vpop.f32.mrf.mxu0
        %332 = vdwg.mxu0
        %v333 = vmax.f32 %v330, 0.0
        %v334 = vld [vmem:[%s2] sm:$0xff]
        %v335 = vld [vmem:[%s2 + $0x8] sm:$0xff]
        %v336 = vld [vmem:[%s2 + $0x10] sm:$0xff]
        %v337 = vld [vmem:[%s2 + $0x18] sm:$0xff]
        %v339 = vlaneseq
        %v340 = vshrl.u32 %v339, 7
        %v341 = vsub.s32 0, %v340
        %v342 = vrot.slane %v248, %v341
        %vm344 = vcmask 261120
        %v346 = vsel %vm344, %v333, 0
        %348 = vmatprep.subr.mxu0 0.0
        %349 = vmatpush1.msra.mxu0 0.0
        %350 = vmatprep.subr.mxu0 0.0
        %351 = vmatpush1.msra.mxu0 0.0
        %352 = vmatprep.subr.mxu0 0.0
        %353 = vmatpush1.msra.mxu0 0.0
        %354 = vmatprep.subr.mxu0 0.0
        %355 = vmatpush1.msra.mxu0 0.0
        %356 = vmatprep.subr.mxu0 0.0
        %357 = vmatpush1.msra.mxu0 0.0
        %358 = vmatprep.subr.mxu0 0.0
        %359 = vmatpush1.msra.mxu0 0.0
        %360 = vmatprep.subr.mxu0 0.0
        %361 = vmatpush1.msra.mxu0 0.0
        %362 = vmatprep.subr.mxu0 0.0
        %363 = vmatpush1.msra.mxu0 0.0
        %364 = vmatprep.subr.mxu0 0.0
        %365 = vmatpush1.msra.mxu0 0.0
        %366 = vmatprep.subr.mxu0 0.0
        %367 = vmatpush1.msra.mxu0 0.0
        %368 = vmatprep.subr.mxu0 0.0
        %369 = vmatpush1.msra.mxu0 0.0
        %370 = vmatprep.subr.mxu0 0.0
        %371 = vmatpush1.msra.mxu0 0.0
        %372 = vmatprep.subr.mxu0 0.0
        %373 = vmatpush1.msra.mxu0 %v337
        %374 = vmatprep.subr.mxu0 0.0
        %375 = vmatpush1.msra.mxu0 %v336
        %376 = vmatprep.subr.mxu0 0.0
        %377 = vmatpush1.msra.mxu0 %v335
        %378 = vmatprep.subr.mxu0 0.0
        %379 = vmatpush1.msra.mxu0 %v334
        %380 = vmatprep.subr.mxu0 0.0
        %381 = vmatpush2.msra.mxu0 0.0
        %382 = vmatprep.subr.mxu0 0.0
        %383 = vmatpush2.msra.mxu0 0.0
        %384 = vmatprep.subr.mxu0 0.0
        %385 = vmatpush2.msra.mxu0 0.0
        %386 = vmatprep.subr.mxu0 0.0
        %387 = vmatpush2.msra.mxu0 0.0
        %388 = vmatprep.subr.mxu0 0.0
        %389 = vmatpush2.msra.mxu0 0.0
        %390 = vmatprep.subr.mxu0 0.0
        %391 = vmatpush2.msra.mxu0 0.0
        %392 = vmatprep.subr.mxu0 0.0
        %393 = vmatpush2.msra.mxu0 0.0
        %394 = vmatprep.subr.mxu0 0.0
        %395 = vmatpush2.msra.mxu0 0.0
        %396 = vmatprep.subr.mxu0 0.0
        %397 = vmatpush2.msra.mxu0 0.0
        %398 = vmatprep.subr.mxu0 0.0
        %399 = vmatpush2.msra.mxu0 0.0
        %400 = vmatprep.subr.mxu0 0.0
        %401 = vmatpush2.msra.mxu0 0.0
        %402 = vmatprep.subr.mxu0 0.0
        %403 = vmatpush2.msra.mxu0 0.0
        %404 = vmatprep.subr.mxu0 0.0
        %405 = vmatpush2.msra.mxu0 0.0
        %406 = vmatprep.subr.mxu0 0.0
        %407 = vmatpush2.msra.mxu0 0.0
        %408 = vmatprep.subr.mxu0 0.0
        %409 = vmatpush2.msra.mxu0 0.0
        %410 = vmatprep.subr.mxu0 0.0
        %411 = vmatpush2.msra.mxu0 0.0
        %412 = vmatprep.mubr.f32.mxu0 0.0
        %413 = vmatmul.mubr.f32.gmra.mxu0 %v346
        %v414 = vpop.f32.mrf.mxu0
        %v415 = vadd.f32 %v342, %v414
        %v416 = vpop.f32.mrf.mxu0
        %417 = vdwg.mxu0
        %v418 = vsel %vm344, %v415, 0.0
        %419 = vadd.xlane.f32.xlu0 %v418
        %v420 = vpop.xlane.xlu0 %419
        %v421 = vrcp.pop 32.0
        %v422 = vmul.f32 %v420, %v421
        %v423 = vsub.f32 %v415, %v422
        %v424 = vmul.f32 %v423, %v423
        %v425 = vsel %vm344, %v424, 0.0
        %426 = vadd.xlane.f32.xlu0 %v425
        %v427 = vpop.xlane.xlu0 %426
        %v428 = vmul.f32 %v427, %v421
        %v429 = vadd.f32 %v428, 1e-05
        %v430 = vrsqrt.pop %v429
        %v431 = vmul.f32 %v423, %v430
        %v432 = vld [vmem:[%s3] sm:$0xff]
        %v433 = vld [vmem:[%s3 + $0x8] sm:$0xff]
        %v434 = vld [vmem:[%s3 + $0x10] sm:$0xff]
        %v435 = vld [vmem:[%s3 + $0x18] sm:$0xff]
        %v437 = vlaneseq
        %v438 = vshrl.u32 %v437, 7
        %v439 = vsub.s32 0, %v438
        %v440 = vrot.slane %v249, %v439
        %v443 = vsel %vm344, %v431, 0
        %445 = vmatprep.subr.mxu0 0.0
        %446 = vmatpush1.msra.mxu0 0.0
        %447 = vmatprep.subr.mxu0 0.0
        %448 = vmatpush1.msra.mxu0 0.0
        %449 = vmatprep.subr.mxu0 0.0
        %450 = vmatpush1.msra.mxu0 0.0
        %451 = vmatprep.subr.mxu0 0.0
        %452 = vmatpush1.msra.mxu0 0.0
        %453 = vmatprep.subr.mxu0 0.0
        %454 = vmatpush1.msra.mxu0 0.0
        %455 = vmatprep.subr.mxu0 0.0
        %456 = vmatpush1.msra.mxu0 0.0
        %457 = vmatprep.subr.mxu0 0.0
        %458 = vmatpush1.msra.mxu0 0.0
        %459 = vmatprep.subr.mxu0 0.0
        %460 = vmatpush1.msra.mxu0 0.0
        %461 = vmatprep.subr.mxu0 0.0
        %462 = vmatpush1.msra.mxu0 0.0
        %463 = vmatprep.subr.mxu0 0.0
        %464 = vmatpush1.msra.mxu0 0.0
        %465 = vmatprep.subr.mxu0 0.0
        %466 = vmatpush1.msra.mxu0 0.0
        %467 = vmatprep.subr.mxu0 0.0
        %468 = vmatpush1.msra.mxu0 0.0
        %469 = vmatprep.subr.mxu0 0.0
        %470 = vmatpush1.msra.mxu0 %v435
        %471 = vmatprep.subr.mxu0 0.0
        %472 = vmatpush1.msra.mxu0 %v434
        %473 = vmatprep.subr.mxu0 0.0
        %474 = vmatpush1.msra.mxu0 %v433
        %475 = vmatprep.subr.mxu0 0.0
        %476 = vmatpush1.msra.mxu0 %v432
        %477 = vmatprep.subr.mxu0 0.0
        %478 = vmatpush2.msra.mxu0 0.0
        %479 = vmatprep.subr.mxu0 0.0
        %480 = vmatpush2.msra.mxu0 0.0
        %481 = vmatprep.subr.mxu0 0.0
        %482 = vmatpush2.msra.mxu0 0.0
        %483 = vmatprep.subr.mxu0 0.0
        %484 = vmatpush2.msra.mxu0 0.0
        %485 = vmatprep.subr.mxu0 0.0
        %486 = vmatpush2.msra.mxu0 0.0
        %487 = vmatprep.subr.mxu0 0.0
        %488 = vmatpush2.msra.mxu0 0.0
        %489 = vmatprep.subr.mxu0 0.0
        %490 = vmatpush2.msra.mxu0 0.0
        %491 = vmatprep.subr.mxu0 0.0
        %492 = vmatpush2.msra.mxu0 0.0
        %493 = vmatprep.subr.mxu0 0.0
        %494 = vmatpush2.msra.mxu0 0.0
        %495 = vmatprep.subr.mxu0 0.0
        %496 = vmatpush2.msra.mxu0 0.0
        %497 = vmatprep.subr.mxu0 0.0
        %498 = vmatpush2.msra.mxu0 0.0
        %499 = vmatprep.subr.mxu0 0.0
        %500 = vmatpush2.msra.mxu0 0.0
        %501 = vmatprep.subr.mxu0 0.0
        %502 = vmatpush2.msra.mxu0 0.0
        %503 = vmatprep.subr.mxu0 0.0
        %504 = vmatpush2.msra.mxu0 0.0
        %505 = vmatprep.subr.mxu0 0.0
        %506 = vmatpush2.msra.mxu0 0.0
        %507 = vmatprep.subr.mxu0 0.0
        %508 = vmatpush2.msra.mxu0 0.0
        %509 = vmatprep.mubr.f32.mxu0 0.0
        %510 = vmatmul.mubr.f32.gmra.mxu0 %v443
        %v511 = vpop.f32.mrf.mxu0
        %v512 = vadd.f32 %v440, %v511
        %v513 = vpop.f32.mrf.mxu0
        %514 = vdwg.mxu0
        %v515 = vmax.f32 %v512, 0.0
        %v516 = vld [vmem:[%s4] sm:$0x1]
        %518 = vset.pattern.permute.xlu0 0
        %519 = vperm.xlu0 %518, %v250
        %v520 = vpop.permute.xlu0 %519
        %v522 = vlaneseq
        %v523 = vshrl.u32 %v522, 7
        %v524 = vsub.s32 0, %v523
        %v525 = vrot.slane %v520, %v524
        %v527 = vsel %vm259, %v516, 0
        %v530 = vsel %vm259, %v515, 0
        %532 = vmatprep.subr.mxu0 0.0
        %533 = vmatpush1.xpose.msra.mxu0 0.0
        %534 = vmatprep.subr.mxu0 0.0
        %535 = vmatpush1.xpose.msra.mxu0 0.0
        %536 = vmatprep.subr.mxu0 0.0
        %537 = vmatpush1.xpose.msra.mxu0 0.0
        %538 = vmatprep.subr.mxu0 0.0
        %539 = vmatpush1.xpose.msra.mxu0 0.0
        %540 = vmatprep.subr.mxu0 0.0
        %541 = vmatpush1.xpose.msra.mxu0 0.0
        %542 = vmatprep.subr.mxu0 0.0
        %543 = vmatpush1.xpose.msra.mxu0 0.0
        %544 = vmatprep.subr.mxu0 0.0
        %545 = vmatpush1.xpose.msra.mxu0 0.0
        %546 = vmatprep.subr.mxu0 0.0
        %547 = vmatpush1.xpose.msra.mxu0 0.0
        %548 = vmatprep.subr.mxu0 0.0
        %549 = vmatpush1.xpose.msra.mxu0 0.0
        %550 = vmatprep.subr.mxu0 0.0
        %551 = vmatpush1.xpose.msra.mxu0 0.0
        %552 = vmatprep.subr.mxu0 0.0
        %553 = vmatpush1.xpose.msra.mxu0 0.0
        %554 = vmatprep.subr.mxu0 0.0
        %555 = vmatpush1.xpose.msra.mxu0 0.0
        %556 = vmatprep.subr.mxu0 0.0
        %557 = vmatpush1.xpose.msra.mxu0 0.0
        %558 = vmatprep.subr.mxu0 0.0
        %559 = vmatpush1.xpose.msra.mxu0 0.0
        %560 = vmatprep.subr.mxu0 0.0
        %561 = vmatpush1.xpose.msra.mxu0 0.0
        %562 = vmatprep.subr.mxu0 0.0
        %563 = vmatpush1.xpose.msra.mxu0 %v530
        %564 = vmatprep.subr.mxu0 0.0
        %565 = vmatpush2.xpose.msra.mxu0 0.0
        %566 = vmatprep.subr.mxu0 0.0
        %567 = vmatpush2.xpose.msra.mxu0 0.0
        %568 = vmatprep.subr.mxu0 0.0
        %569 = vmatpush2.xpose.msra.mxu0 0.0
        %570 = vmatprep.subr.mxu0 0.0
        %571 = vmatpush2.xpose.msra.mxu0 0.0
        %572 = vmatprep.subr.mxu0 0.0
        %573 = vmatpush2.xpose.msra.mxu0 0.0
        %574 = vmatprep.subr.mxu0 0.0
        %575 = vmatpush2.xpose.msra.mxu0 0.0
        %576 = vmatprep.subr.mxu0 0.0
        %577 = vmatpush2.xpose.msra.mxu0 0.0
        %578 = vmatprep.subr.mxu0 0.0
        %579 = vmatpush2.xpose.msra.mxu0 0.0
        %580 = vmatprep.subr.mxu0 0.0
        %581 = vmatpush2.xpose.msra.mxu0 0.0
        %582 = vmatprep.subr.mxu0 0.0
        %583 = vmatpush2.xpose.msra.mxu0 0.0
        %584 = vmatprep.subr.mxu0 0.0
        %585 = vmatpush2.xpose.msra.mxu0 0.0
        %586 = vmatprep.subr.mxu0 0.0
        %587 = vmatpush2.xpose.msra.mxu0 0.0
        %588 = vmatprep.subr.mxu0 0.0
        %589 = vmatpush2.xpose.msra.mxu0 0.0
        %590 = vmatprep.subr.mxu0 0.0
        %591 = vmatpush2.xpose.msra.mxu0 0.0
        %592 = vmatprep.subr.mxu0 0.0
        %593 = vmatpush2.xpose.msra.mxu0 0.0
        %594 = vmatprep.subr.mxu0 0.0
        %595 = vmatpush2.xpose.msra.mxu0 0.0
        %596 = vmatprep.mubr.f32.mxu0 0.0
        %597 = vmatmul.mubr.f32.gmra.mxu0 %v527
        %v598 = vpop.f32.mrf.mxu0
        %v599 = vadd.f32 %v525, %v598
        %v600 = vpop.f32.mrf.mxu0
        %601 = vdwg.mxu0
        %v602 = vxor.u32 %v599, 2147483648
        %v603 = vmul.f32 %v602, 1.442695
        %v604 = vpow.pop %v603
        %v605 = vadd.f32 %v604, 1.0
        %v606 = vrcp.pop %v605
        %v607 = vmul.f32 1.0, %v606
        %vm608 = vcmask 57344
        %609 = vst.msk [vmem:[%s241] sm:$0x1] %vm608, %v607
        %s610 = sand.u32 %s159, 1
        %s611 = scalar_lea.sflag [#allocation3], %s610
        %s612 = sand.u32 %s159, 1
        %s613 = scalar_lea.vmem [#allocation2], %s612
        // Predicated region
        $region45: #{tpu_custom_call.1} parent=43 // pred_check
          %p614 = pneg %p169
        $region46: #{tpu_custom_call.1} parent=43 // pred_check_branch
          %616 = sbr.rel (%p614) target = $region48
        $region47: #{tpu_custom_call.1} parent=43 // pred_region
          %s618 = ssub.s32 16, 16
          %619 = vsyncadd %s611, %s618
          %s620 = smul.addr %s20, 16
          %s621 = scalar_lea.hbm %s6, %s620
          %s623 = sshll.u32 %s613, 4
          %s624 = int_to_ptr.vmem [resolvable:$true] %s623
          %626 = dma.vmem_to_hbm [thread:$0]  %s624, 16, %s621, %s611
        $region48: #{tpu_custom_call.1} parent=43 // pred_fallthru
          _
      $region44: #{tpu_custom_call.1} parent=5 // pred_fallthru
        _
      %p627 = scmp.le.s32.totalorder 2, %s15
      // Predicated region
      $region49: #{tpu_custom_call.1} parent=5 // pred_check
        %p628 = pneg %p627
      $region50: #{tpu_custom_call.1} parent=5 // pred_check_branch
        %630 = sbr.rel (%p628) target = $region52
      $region51: #{tpu_custom_call.1} parent=5 // pred_region
        %s631 = ssub.s32 %s15, 2
        // Predicated region
        $region53: #{tpu_custom_call.1} parent=51 // pred_check
          %p632 = pneg %p175
        $region54: #{tpu_custom_call.1} parent=51 // pred_check_branch
          %634 = sbr.rel (%p632) target = $region56
        $region55: #{tpu_custom_call.1} parent=51 // pred_region
          %s635 = sand.u32 %s160, 1
          %s636 = scalar_lea.sflag [#allocation3], %s635
          %s637 = sand.u32 %s160, 1
          %s638 = scalar_lea.vmem [#allocation2], %s637
          %639 = dma.done %s636, 16
        $region56: #{tpu_custom_call.1} parent=51 // pred_fallthru
          _
      $region52: #{tpu_custom_call.1} parent=5 // pred_fallthru
        _
    $region6: #{tpu_custom_call.1} parent=1 // loop_footer
      %s19 = sadd.s32 1, %s15
    $region7: #{tpu_custom_call.1} parent=1 // loop_footer_branch
      %14 = sbr.rel target = $region3
    $region8: #{tpu_custom_call.1} parent=1 // loop_exit
      _
    %640 = vsyncpa [#allocation3], 1
    %s641 = scalar_lea.sflag [#allocation3], 1
    %642 = vsyncpa %s641, 1

</llo_original>
